<compile_context>
chip_gen: v7x
topology: tpu7x:2x2x1
jax: 0.10.0
libtpu: 0.0.40
codegen_flags: <defaults>
</compile_context>

<pallas_src>
import functools

import jax
import jax.numpy as jnp
from jax.experimental import pallas as pl
from jax.experimental.pallas import tpu as pltpu

_GRAY = (65.738 / 256.0, 129.057 / 256.0, 25.064 / 256.0)
_EPS = 1e-6


def _roundup(x, m):
    return ((x + m - 1) // m) * m


def _grad_loss_kernel(out_ref, gt_ref, loss_ref, *, C, H, W):
    """One grid step: `nb` images of each input -> raw sum(|grad_out - grad_gt|).

    Block layout is lane-dense (nb, C*H*W): channel c of image n lives in the
    lane window [c*H*W, (c+1)*H*W) of row n, so channel extraction is a static
    lane slice instead of a cross-sublane gather.
    """
    HW = H * W

    def to_gray(ref):
        # Compute in f32 regardless of the (possibly bf16) storage dtype.
        if C == 3:
            r = ref[:, 0 * HW:1 * HW].astype(jnp.float32)
            g = ref[:, 1 * HW:2 * HW].astype(jnp.float32)
            b = ref[:, 2 * HW:3 * HW].astype(jnp.float32)
            return r * _GRAY[0] + g * _GRAY[1] + b * _GRAY[2]   # (nb, HW)
        return ref[...].astype(jnp.float32)                      # (nb, HW)

    gray_out = to_gray(out_ref)
    gray_gt = to_gray(gt_ref)

    # Zero-padding boundary masks of the 3x3 finite-difference "conv".
    # Built once at shape (1, HW) (per lane column) and broadcast over the nb
    # rows by jnp.where -- saves VALU work and vregs vs. full (nb, HW) masks.
    flat = jax.lax.broadcasted_iota(jnp.int32, (1, HW), 1)
    col = flat % W
    m_left = col == 0               # x[.., j-1] out of range
    m_right = col == W - 1          # x[.., j+1] out of range
    m_top = flat < W                # x[i-1, ..] out of range
    m_bot = flat >= (H - 1) * W     # x[i+1, ..] out of range

    def grad_mag(g):
        # Each image is one sublane row of (nb, HW): all neighbour shifts are
        # lane rolls on the flattened image; the masks kill any wrap-around
        # across row / image boundaries (== F.conv2d(..., padding=1) zeros).
        x_jp1 = jnp.where(m_right, 0.0, pltpu.roll(g, shift=HW - 1, axis=1))
        x_jm1 = jnp.where(m_left, 0.0, pltpu.roll(g, shift=1, axis=1))
        x_im1 = jnp.where(m_top, 0.0, pltpu.roll(g, shift=W, axis=1))
        x_ip1 = jnp.where(m_bot, 0.0, pltpu.roll(g, shift=HW - W, axis=1))
        # Naming follows the PyTorch module: weight_v picks the horizontal
        # central difference x[i, j+1] - x[i, j-1]; weight_h the vertical one.
        g_v = x_jp1 - x_jm1
        g_h = x_im1 - x_ip1
        return jnp.sqrt(g_v * g_v + g_h * g_h + _EPS)

    diff = jnp.abs(grad_mag(gray_out) - grad_mag(gray_gt))
    # Hierarchical reduction (lanes first), raw sum only -- the single divide
    # by N*H*W happens once in the wrapper, so the L1 mean is exact.
    loss_ref[0, 0] = jnp.sum(jnp.sum(diff, axis=1, keepdims=True))


def _vmem_capacity_bytes():
    """Per-core VMEM capacity; conservative (v7x-class) fallback if unknown."""
    try:
        cap = getattr(pltpu.get_tpu_info(), "vmem_capacity_bytes", None)
        if cap:
            return int(cap)
    except Exception:
        pass
    return 64 << 20


def grad_loss(output, gt_img):
    assert output.shape == gt_img.shape
    assert output.dtype == gt_img.dtype
    N, C, H, W = output.shape
    assert C in (1, 3), "GradLayer expects 1- or 3-channel NCHW input"
    HW = H * W
    CHW = C * HW

    # Lane-dense 2-D layout: (N, C*H*W).  Inputs are consumed in whatever
    # dtype the producer supplies (f32 or bf16 -- bf16 halves HBM reads on the
    # bandwidth-bound v5e/v6e); compute is always f32 in-kernel.
    # TODO(synk): have the producer emit this flattened layout directly so the
    # reshape is guaranteed to be a bitcast (for W < 128 XLA may copy here).
    out2 = output.reshape(N, CHW)
    gt2 = gt_img.reshape(N, CHW)

    # ---- block-size selection with *padded* VMEM accounting ----------------
    itemsize = jnp.dtype(output.dtype).itemsize
    sublane_mult = max(8, 32 // itemsize)        # 8 rows for f32, 16 for bf16
    lane_pad_in = _roundup(CHW, 128)
    lane_pad_gray = _roundup(HW, 128)

    def footprint(nb):
        # 2 inputs x 2 pipeline buffers of the (padded) input block ...
        in_block = _roundup(nb, sublane_mult) * lane_pad_in * itemsize
        # ... plus ~8 simultaneously-live gray-sized f32 temporaries.
        temps = 8 * _roundup(nb, 8) * lane_pad_gray * 4
        return 4 * in_block + temps

    # Generation-aware budget: ~48 MiB-class total on v7x (64 MiB physical),
    # roughly 2x that on v5e/v6e (128 MiB physical).
    vmem_cap = _vmem_capacity_bytes()
    vmem_limit = min(vmem_cap * 3 // 4, 112 << 20)
    budget = int(vmem_limit * 0.85)

    # nb must divide N and keep the block's sublane dim aligned (nb % 8 == 0)
    # unless it spans the full batch (full-extent dims are always legal).
    valid = [d for d in range(1, N + 1) if N % d == 0 and (d == N or d % 8 == 0)]
    fitting = [d for d in valid if footprint(d) <= budget]
    if not fitting:
        nb = min(valid)
    else:
        nb = max(fitting)
        # Prefer leaving a few grid steps so both v7x TensorCores get work and
        # the DMA of step i+1 overlaps the compute of step i.
        for min_steps in (4, 2):
            cands = [d for d in fitting if N // d >= min_steps]
            if cands:
                nb = max(cands)
                break
    steps = N // nb
    # Make sure the scoped limit covers what we picked (capped below capacity).
    vmem_limit = min(max(vmem_limit, footprint(nb) + (4 << 20)), vmem_cap * 7 // 8)
    # TODO(synk): for single images whose (1, C*H*W) block exceeds the VMEM
    # budget, additionally tile H with a 1-row halo.

    kernel = functools.partial(_grad_loss_kernel, C=C, H=H, W=W)

    partials = pl.pallas_call(
        kernel,
        out_shape=jax.ShapeDtypeStruct((steps, 1), jnp.float32),
        grid=(steps,),
        in_specs=[
            pl.BlockSpec((nb, CHW), lambda i: (i, 0)),
            pl.BlockSpec((nb, CHW), lambda i: (i, 0)),
        ],
        out_specs=pl.BlockSpec((1, 1), lambda i: (i, 0),
                               memory_space=pltpu.MemorySpace.SMEM),
        compiler_params=pltpu.CompilerParams(
            dimension_semantics=("parallel",),
            vmem_limit_bytes=int(vmem_limit)),
        cost_estimate=pl.CostEstimate(
            flops=int(40 * N * HW),
            transcendentals=int(2 * N * HW),
            bytes_accessed=int(2 * N * CHW * itemsize)),
    )(out2, gt2)

    # Tiny epilogue: combine the per-block raw sums and normalize exactly once
    # (nn.L1Loss mean over the (N, 1, H, W) gradient maps => / (N*H*W)).
    return jnp.sum(partials) / (N * H * W)


if __name__ == "__main__":
    key = jax.random.PRNGKey(0)
    k1, k2 = jax.random.split(key)
    # NCHW, 3-channel images (exercises the gray-conversion path like PyTorch).
    output = jax.random.uniform(k1, (2, 3, 16, 16), dtype=jnp.float32)
    gt_img = jax.random.uniform(k2, (2, 3, 16, 16), dtype=jnp.float32)

    loss = grad_loss(output, gt_img)
    jax.block_until_ready(loss)
    print("KERNEL_OK")
</pallas_src>

<mosaic_0001>
module attributes {stable_mosaic.version = 11 : i64} {
  func.func @_grad_loss_kernel(%arg0: i32, %arg1: memref<2x768xf32, #tpu.memory_space<vmem>>, %arg2: memref<2x768xf32, #tpu.memory_space<vmem>>, %arg3: memref<1x1xf32, #tpu.memory_space<smem>>) attributes {dimension_semantics = [#tpu.dimension_semantics<parallel>], iteration_bounds = array<i64: 1>, scalar_prefetch = 0 : i64, scratch_operands = 0 : i64, tpu.core_type = #tpu.core_type<tc>, window_params = [{transform_indices = @transform_0, window_bounds = array<i64: 2, 768>}, {transform_indices = @transform_1, window_bounds = array<i64: 2, 768>}, {transform_indices = @transform_2, window_bounds = array<i64: 1, 1>}]} {
    %c0 = arith.constant 0 : index
    %c0_0 = arith.constant 0 : index
    %0 = vector.load %arg1[%c0, %c0_0] : memref<2x768xf32, #tpu.memory_space<vmem>>, vector<2x256xf32>
    %c0_1 = arith.constant 0 : index
    %c256 = arith.constant 256 : index
    %1 = vector.load %arg1[%c0_1, %c256] : memref<2x768xf32, #tpu.memory_space<vmem>>, vector<2x256xf32>
    %c0_2 = arith.constant 0 : index
    %c512 = arith.constant 512 : index
    %2 = vector.load %arg1[%c0_2, %c512] : memref<2x768xf32, #tpu.memory_space<vmem>>, vector<2x256xf32>
    %cst = arith.constant 0.256789058 : f32
    %3 = vector.broadcast %cst : f32 to vector<2x256xf32>
    %4 = arith.mulf %0, %3 : vector<2x256xf32>
    %cst_3 = arith.constant 0.504128933 : f32
    %5 = vector.broadcast %cst_3 : f32 to vector<2x256xf32>
    %6 = arith.mulf %1, %5 : vector<2x256xf32>
    %7 = arith.addf %4, %6 : vector<2x256xf32>
    %cst_4 = arith.constant 0.0979062467 : f32
    %8 = vector.broadcast %cst_4 : f32 to vector<2x256xf32>
    %9 = arith.mulf %2, %8 : vector<2x256xf32>
    %10 = arith.addf %7, %9 : vector<2x256xf32>
    %c0_5 = arith.constant 0 : index
    %c0_6 = arith.constant 0 : index
    %11 = vector.load %arg2[%c0_5, %c0_6] : memref<2x768xf32, #tpu.memory_space<vmem>>, vector<2x256xf32>
    %c0_7 = arith.constant 0 : index
    %c256_8 = arith.constant 256 : index
    %12 = vector.load %arg2[%c0_7, %c256_8] : memref<2x768xf32, #tpu.memory_space<vmem>>, vector<2x256xf32>
    %c0_9 = arith.constant 0 : index
    %c512_10 = arith.constant 512 : index
    %13 = vector.load %arg2[%c0_9, %c512_10] : memref<2x768xf32, #tpu.memory_space<vmem>>, vector<2x256xf32>
    %cst_11 = arith.constant 0.256789058 : f32
    %14 = vector.broadcast %cst_11 : f32 to vector<2x256xf32>
    %15 = arith.mulf %11, %14 : vector<2x256xf32>
    %cst_12 = arith.constant 0.504128933 : f32
    %16 = vector.broadcast %cst_12 : f32 to vector<2x256xf32>
    %17 = arith.mulf %12, %16 : vector<2x256xf32>
    %18 = arith.addf %15, %17 : vector<2x256xf32>
    %cst_13 = arith.constant 0.0979062467 : f32
    %19 = vector.broadcast %cst_13 : f32 to vector<2x256xf32>
    %20 = arith.mulf %13, %19 : vector<2x256xf32>
    %21 = arith.addf %18, %20 : vector<2x256xf32>
    %22 = tpu.iota {dimensions = array<i32: 1>} : vector<1x256xi32>
    %c16_i32 = arith.constant 16 : i32
    %c0_i32 = arith.constant 0 : i32
    %23 = arith.cmpi eq, %c16_i32, %c0_i32 : i32
    %c1_i32 = arith.constant 1 : i32
    %24 = arith.select %23, %c1_i32, %c16_i32 : i32
    %25 = vector.broadcast %24 : i32 to vector<1x256xi32>
    %26 = arith.remsi %22, %25 : vector<1x256xi32>
    %c0_i32_14 = arith.constant 0 : i32
    %27 = vector.broadcast %c0_i32_14 : i32 to vector<1x256xi32>
    %28 = arith.cmpi ne, %26, %27 : vector<1x256xi32>
    %c0_i32_15 = arith.constant 0 : i32
    %29 = vector.broadcast %c0_i32_15 : i32 to vector<1x256xi32>
    %30 = arith.cmpi slt, %26, %29 : vector<1x256xi32>
    %c0_i32_16 = arith.constant 0 : i32
    %31 = arith.cmpi slt, %24, %c0_i32_16 : i32
    %32 = vector.broadcast %31 : i1 to vector<1x256xi1>
    %33 = vector.broadcast %32 : vector<1x256xi1> to vector<1x256xi1>
    %34 = arith.xori %30, %33 : vector<1x256xi1>
    %35 = arith.andi %34, %28 : vector<1x256xi1>
    %36 = vector.broadcast %24 : i32 to vector<1x256xi32>
    %37 = arith.addi %26, %36 : vector<1x256xi32>
    %38 = arith.select %35, %37, %26 : vector<1x256xi1>, vector<1x256xi32>
    %c0_i32_17 = arith.constant 0 : i32
    %39 = vector.broadcast %c0_i32_17 : i32 to vector<1x256xi32>
    %40 = arith.cmpi eq, %38, %39 : vector<1x256xi32>
    %c15_i32 = arith.constant 15 : i32
    %41 = vector.broadcast %c15_i32 : i32 to vector<1x256xi32>
    %42 = arith.cmpi eq, %38, %41 : vector<1x256xi32>
    %c16_i32_18 = arith.constant 16 : i32
    %43 = vector.broadcast %c16_i32_18 : i32 to vector<1x256xi32>
    %44 = arith.cmpi slt, %22, %43 : vector<1x256xi32>
    %c240_i32 = arith.constant 240 : i32
    %45 = vector.broadcast %c240_i32 : i32 to vector<1x256xi32>
    %46 = arith.cmpi sge, %22, %45 : vector<1x256xi32>
    %c255_i32 = arith.constant 255 : i32
    %47 = tpu.dynamic_rotate %10 by %c255_i32 dim 1 : vector<2x256xf32>, i32 -> vector<2x256xf32>
    %cst_19 = arith.constant 0.000000e+00 : f32
    %48 = vector.shape_cast %42 : vector<1x256xi1> to vector<1x256xi1>
    %49 = vector.broadcast %48 : vector<1x256xi1> to vector<2x256xi1>
    %50 = vector.broadcast %cst_19 : f32 to vector<2x256xf32>
    %51 = arith.select %49, %50, %47 : vector<2x256xi1>, vector<2x256xf32>
    %c1_i32_20 = arith.constant 1 : i32
    %52 = tpu.dynamic_rotate %10 by %c1_i32_20 dim 1 : vector<2x256xf32>, i32 -> vector<2x256xf32>
    %cst_21 = arith.constant 0.000000e+00 : f32
    %53 = vector.shape_cast %40 : vector<1x256xi1> to vector<1x256xi1>
    %54 = vector.broadcast %53 : vector<1x256xi1> to vector<2x256xi1>
    %55 = vector.broadcast %cst_21 : f32 to vector<2x256xf32>
    %56 = arith.select %54, %55, %52 : vector<2x256xi1>, vector<2x256xf32>
    %c16_i32_22 = arith.constant 16 : i32
    %57 = tpu.dynamic_rotate %10 by %c16_i32_22 dim 1 : vector<2x256xf32>, i32 -> vector<2x256xf32>
    %cst_23 = arith.constant 0.000000e+00 : f32
    %58 = vector.shape_cast %44 : vector<1x256xi1> to vector<1x256xi1>
    %59 = vector.broadcast %58 : vector<1x256xi1> to vector<2x256xi1>
    %60 = vector.broadcast %cst_23 : f32 to vector<2x256xf32>
    %61 = arith.select %59, %60, %57 : vector<2x256xi1>, vector<2x256xf32>
    %c240_i32_24 = arith.constant 240 : i32
    %62 = tpu.dynamic_rotate %10 by %c240_i32_24 dim 1 : vector<2x256xf32>, i32 -> vector<2x256xf32>
    %cst_25 = arith.constant 0.000000e+00 : f32
    %63 = vector.shape_cast %46 : vector<1x256xi1> to vector<1x256xi1>
    %64 = vector.broadcast %63 : vector<1x256xi1> to vector<2x256xi1>
    %65 = vector.broadcast %cst_25 : f32 to vector<2x256xf32>
    %66 = arith.select %64, %65, %62 : vector<2x256xi1>, vector<2x256xf32>
    %67 = arith.subf %51, %56 : vector<2x256xf32>
    %68 = arith.subf %61, %66 : vector<2x256xf32>
    %69 = arith.mulf %67, %67 : vector<2x256xf32>
    %70 = arith.mulf %68, %68 : vector<2x256xf32>
    %71 = arith.addf %69, %70 : vector<2x256xf32>
    %cst_26 = arith.constant 9.99999997E-7 : f32
    %72 = vector.broadcast %cst_26 : f32 to vector<2x256xf32>
    %73 = arith.addf %71, %72 : vector<2x256xf32>
    %74 = math.sqrt %73 : vector<2x256xf32>
    %c255_i32_27 = arith.constant 255 : i32
    %75 = tpu.dynamic_rotate %21 by %c255_i32_27 dim 1 : vector<2x256xf32>, i32 -> vector<2x256xf32>
    %cst_28 = arith.constant 0.000000e+00 : f32
    %76 = vector.shape_cast %42 : vector<1x256xi1> to vector<1x256xi1>
    %77 = vector.broadcast %76 : vector<1x256xi1> to vector<2x256xi1>
    %78 = vector.broadcast %cst_28 : f32 to vector<2x256xf32>
    %79 = arith.select %77, %78, %75 : vector<2x256xi1>, vector<2x256xf32>
    %c1_i32_29 = arith.constant 1 : i32
    %80 = tpu.dynamic_rotate %21 by %c1_i32_29 dim 1 : vector<2x256xf32>, i32 -> vector<2x256xf32>
    %cst_30 = arith.constant 0.000000e+00 : f32
    %81 = vector.shape_cast %40 : vector<1x256xi1> to vector<1x256xi1>
    %82 = vector.broadcast %81 : vector<1x256xi1> to vector<2x256xi1>
    %83 = vector.broadcast %cst_30 : f32 to vector<2x256xf32>
    %84 = arith.select %82, %83, %80 : vector<2x256xi1>, vector<2x256xf32>
    %c16_i32_31 = arith.constant 16 : i32
    %85 = tpu.dynamic_rotate %21 by %c16_i32_31 dim 1 : vector<2x256xf32>, i32 -> vector<2x256xf32>
    %cst_32 = arith.constant 0.000000e+00 : f32
    %86 = vector.shape_cast %44 : vector<1x256xi1> to vector<1x256xi1>
    %87 = vector.broadcast %86 : vector<1x256xi1> to vector<2x256xi1>
    %88 = vector.broadcast %cst_32 : f32 to vector<2x256xf32>
    %89 = arith.select %87, %88, %85 : vector<2x256xi1>, vector<2x256xf32>
    %c240_i32_33 = arith.constant 240 : i32
    %90 = tpu.dynamic_rotate %21 by %c240_i32_33 dim 1 : vector<2x256xf32>, i32 -> vector<2x256xf32>
    %cst_34 = arith.constant 0.000000e+00 : f32
    %91 = vector.shape_cast %46 : vector<1x256xi1> to vector<1x256xi1>
    %92 = vector.broadcast %91 : vector<1x256xi1> to vector<2x256xi1>
    %93 = vector.broadcast %cst_34 : f32 to vector<2x256xf32>
    %94 = arith.select %92, %93, %90 : vector<2x256xi1>, vector<2x256xf32>
    %95 = arith.subf %79, %84 : vector<2x256xf32>
    %96 = arith.subf %89, %94 : vector<2x256xf32>
    %97 = arith.mulf %95, %95 : vector<2x256xf32>
    %98 = arith.mulf %96, %96 : vector<2x256xf32>
    %99 = arith.addf %97, %98 : vector<2x256xf32>
    %cst_35 = arith.constant 9.99999997E-7 : f32
    %100 = vector.broadcast %cst_35 : f32 to vector<2x256xf32>
    %101 = arith.addf %99, %100 : vector<2x256xf32>
    %102 = math.sqrt %101 : vector<2x256xf32>
    %103 = arith.subf %74, %102 : vector<2x256xf32>
    %104 = math.absf %103 : vector<2x256xf32>
    %cst_36 = arith.constant dense<0.000000e+00> : vector<2xf32>
    %105 = vector.multi_reduction <add>, %104, %cst_36 [1] : vector<2x256xf32> to vector<2xf32>
    %106 = vector.shape_cast %105 : vector<2xf32> to vector<2x1xf32>
    %107 = vector.shape_cast %106 : vector<2x1xf32> to vector<1x2x1xf32>
    %cst_37 = arith.constant dense<0.000000e+00> : vector<1xf32>
    %108 = vector.multi_reduction <add>, %107, %cst_37 [1, 2] : vector<1x2x1xf32> to vector<1xf32>
    %109 = vector.shape_cast %108 : vector<1xf32> to vector<1x1x1xf32>
    %110 = vector.extract %109[0, 0, 0] : f32 from vector<1x1x1xf32>
    %c0_38 = arith.constant 0 : index
    %c0_39 = arith.constant 0 : index
    %111 = memref.load %arg3[%c0_38, %c0_39] : memref<1x1xf32, #tpu.memory_space<smem>>
    memref.store %110, %arg3[%c0_38, %c0_39] : memref<1x1xf32, #tpu.memory_space<smem>>
    return
  }
  func.func @transform_0(%arg0: i32) -> (i32, i32) {
    %c0_i32 = arith.constant 0 : i32
    %c0_i32_0 = arith.constant 0 : i32
    return %arg0, %c0_i32 : i32, i32
  }
  func.func @transform_1(%arg0: i32) -> (i32, i32) {
    %c0_i32 = arith.constant 0 : i32
    %c0_i32_0 = arith.constant 0 : i32
    return %arg0, %c0_i32 : i32, i32
  }
  func.func @transform_2(%arg0: i32) -> (i32, i32) {
    %c0_i32 = arith.constant 0 : i32
    %c0_i32_0 = arith.constant 0 : i32
    return %arg0, %c0_i32 : i32, i32
  }
}

</mosaic_0001>

<llo_original>
// kernel: tpu_custom_call.1
$region0: #{tpu_custom_call.1}
  #allocation0 [shape = 'u32[]', space=smem, size = 0x4, offset = 0x4, fixed_abs, tag = 'smem constant byte address 0x4 - core index']
  #allocation1 [shape = 'u32[144,128]{1,0:T(1,128)}', space=vmem, size = 0x12000, scoped, tag = 'internal scratch']
  %s0 = inlined_call_operand.hbm [shape: f32[2,768], index: 0, kind: input, shape index: {}]
  %s1 = inlined_call_operand.hbm [shape: f32[2,768], index: 1, kind: input, shape index: {}]
  %s2 = inlined_call_operand.hbm [shape: f32[1,1], index: 2, kind: output, shape index: {}]
  %s3 = sld [smem:[#allocation0]]
  $region26: #{tpu_custom_call.1} parent=0
    _
  %s5 = ssub.s32 1, %s3
  %s6 = scalar_select 0, %s5, %s3
  $region1: #{tpu_custom_call.1} parent=0
    #allocation2 [shape = 'u8[6144]{0}', space=vmem, size = 0x1800, scoped, tag = 'input window, operand 0, single buffered']
    #allocation3 [shape = 's32[1]{0}', space=sflag, size = 0x4, scoped, tag = 'scoped memory for tpu_custom_call.1']
    #allocation4 [shape = 's32[1]{0}', space=sflag, size = 0x4, scoped, tag = 'scoped memory for tpu_custom_call.1']
    #allocation5 [shape = 'u8[6144]{0}', space=vmem, size = 0x1800, scoped, tag = 'input window, operand 1, single buffered']
    #allocation6 [shape = 's32[1]{0}', space=sflag, size = 0x4, scoped, tag = 'scoped memory for tpu_custom_call.1']
    #allocation7 [shape = 'u8[512]{0}', space=smem, size = 0x200, scoped, tag = 'output window, operand 0, single buffered']
    %7 = vsyncpa [#allocation3], 0
    %8 = vsyncpa [#allocation6], 0
    %9 = vsyncpa [#allocation4], 0
    // Predicated region
    $region2: #{tpu_custom_call.1} parent=1 // pred_check
      _
    $region3: #{tpu_custom_call.1} parent=1 // pred_check_branch
      %11 = sbr.rel (0) target = $region5
    $region4: #{tpu_custom_call.1} parent=1 // pred_region
      %s13 = ssub.s32 192, 192
      %14 = vsyncadd [#allocation3], %s13
      %s16 = sshll.u32 [#allocation2], 4
      %s17 = int_to_ptr.vmem [resolvable:$true] %s16
      %19 = dma.hbm_to_vmem [thread:$0]  %s0, 192, %s17, [#allocation3]
    $region5: #{tpu_custom_call.1} parent=1 // pred_fallthru
      _
    // Predicated region
    $region6: #{tpu_custom_call.1} parent=1 // pred_check
      _
    $region7: #{tpu_custom_call.1} parent=1 // pred_check_branch
      %21 = sbr.rel (0) target = $region9
    $region8: #{tpu_custom_call.1} parent=1 // pred_region
      %s23 = ssub.s32 192, 192
      %24 = vsyncadd [#allocation6], %s23
      %s26 = sshll.u32 [#allocation5], 4
      %s27 = int_to_ptr.vmem [resolvable:$true] %s26
      %29 = dma.hbm_to_vmem [thread:$0]  %s1, 192, %s27, [#allocation6]
    $region9: #{tpu_custom_call.1} parent=1 // pred_fallthru
      _
    // Predicated region
    $region10: #{tpu_custom_call.1} parent=1 // pred_check
      _
    $region11: #{tpu_custom_call.1} parent=1 // pred_check_branch
      %31 = sbr.rel (0) target = $region13
    $region12: #{tpu_custom_call.1} parent=1 // pred_region
      %32 = dma.done [#allocation3], 192
    $region13: #{tpu_custom_call.1} parent=1 // pred_fallthru
      _
    // Predicated region
    $region14: #{tpu_custom_call.1} parent=1 // pred_check
      _
    $region15: #{tpu_custom_call.1} parent=1 // pred_check_branch
      %34 = sbr.rel (0) target = $region17
    $region16: #{tpu_custom_call.1} parent=1 // pred_region
      %35 = dma.done [#allocation6], 192
    $region17: #{tpu_custom_call.1} parent=1 // pred_fallthru
      _
    %v36 = vld [vmem:[#allocation2] sm:$0xf]
    %v37 = vld [vmem:[#allocation2 + $0x4] sm:$0xf]
    %v38 = vld [vmem:[#allocation2 + $0x8] sm:$0xf]
    %v39 = vmul.f32 %v36, 0.25678906
    %v40 = vmul.f32 %v37, 0.50412893
    %v41 = vadd.f32 %v39, %v40
    %v42 = vmul.f32 %v38, 0.09790625
    %v43 = vadd.f32 %v41, %v42
    %v44 = vld [vmem:[#allocation5] sm:$0xf]
    %v45 = vld [vmem:[#allocation5 + $0x4] sm:$0xf]
    %v46 = vld [vmem:[#allocation5 + $0x8] sm:$0xf]
    %v47 = vmul.f32 %v44, 0.25678906
    %v48 = vmul.f32 %v45, 0.50412893
    %v49 = vadd.f32 %v47, %v48
    %v50 = vmul.f32 %v46, 0.09790625
    %v51 = vadd.f32 %v49, %v50
    %v52 = vlaneseq
    %v53 = vand.u32 %v52, 127
    %v54 = vadd.s32 %v53, 128
    %vm55 = vcmp.lt.s32.totalorder %v53, 0
    %v56 = vsub.s32 0, %v53
    %v57 = vsel %vm55, %v56, %v53
    %v58 = vshrl.u32 %v57, 4
    %v59 = vand.u32 %v57, 15
    %v60 = vsub.s32 0, %v59
    %v61 = vsel %vm55, %v60, %v59
    %vm62 = vcmp.lt.s32.totalorder %v54, 0
    %v63 = vsub.s32 0, %v54
    %v64 = vsel %vm62, %v63, %v54
    %v65 = vshrl.u32 %v64, 4
    %v66 = vand.u32 %v64, 15
    %v67 = vsub.s32 0, %v66
    %v68 = vsel %vm62, %v67, %v66
    %vm69 = vcmp.ne.s32.totalorder %v61, 0
    %vm70 = vcmp.ne.s32.totalorder %v68, 0
    %vm71 = vcmp.lt.s32.totalorder %v61, 0
    %vm72 = vcmp.lt.s32.totalorder %v68, 0
    %vm73 = vmand %vm71, %vm69
    %vm74 = vmand %vm72, %vm70
    %v75 = vadd.s32 %v61, 16
    %v76 = vadd.s32 %v68, 16
    %v77 = vsel %vm73, %v75, %v61
    %v78 = vsel %vm74, %v76, %v68
    %vm79 = vcmp.eq.s32.totalorder %v77, 0
    %vm80 = vcmp.eq.s32.totalorder %v78, 0
    %vm81 = vcmp.eq.s32.totalorder %v77, 15
    %vm82 = vcmp.eq.s32.totalorder %v78, 15
    %vm83 = vcmp.lt.s32.totalorder %v53, 16
    %vm84 = vcmp.lt.s32.totalorder %v54, 16
    %vm85 = vcmp.ge.s32.totalorder %v53, 240
    %vm86 = vcmp.ge.s32.totalorder %v54, 240
    %v89 = vunpack.c.l.s4 1983009808
    %v90 = vunpack.c.0.s8 %v89
    %v91 = vlaneseq
    %v92 = vshrl.u32 %v91, 7
    %v93 = vsub.s32 %v90, %v92
    %v94 = vrot.slane %v43, %v93
    %v95 = vcombine.high %v94, %v94
    %98 = vrot.lane.b32.xlu0 %v94, 127
    %v99 = vpop.permute.xlu0 %98
    %100 = vrot.lane.b32.xlu0 %v95, 127
    %v101 = vpop.permute.xlu0 %100
    %vm102 = vcmp.lt.s32.totalorder %v53, 127
    %v103 = vsel %vm102, %v99, %v101
    %v104 = vsel %vm102, %v101, %v99
    %v105 = vsel %vm81, 1, 0
    %v106 = vsel %vm82, 1, 0
    %vm107 = vcmp.eq.s32.totalorder %v105, 1
    %vm108 = vcmp.eq.s32.totalorder %v106, 1
    %v109 = vsel %vm107, 0.0, %v103
    %v110 = vsel %vm108, 0.0, %v104
    %111 = vrot.lane.b32.xlu0 %v94, 1
    %v112 = vpop.permute.xlu0 %111
    %113 = vrot.lane.b32.xlu0 %v95, 1
    %v114 = vpop.permute.xlu0 %113
    %vm115 = vcmp.lt.s32.totalorder %v53, 1
    %v116 = vsel %vm115, %v112, %v114
    %v117 = vsel %vm115, %v114, %v112
    %v118 = vsel %vm79, 1, 0
    %v119 = vsel %vm80, 1, 0
    %vm120 = vcmp.eq.s32.totalorder %v118, 1
    %vm121 = vcmp.eq.s32.totalorder %v119, 1
    %v122 = vsel %vm120, 0.0, %v117
    %v123 = vsel %vm121, 0.0, %v116
    %124 = vrot.lane.b32.xlu0 %v94, 16
    %v125 = vpop.permute.xlu0 %124
    %126 = vrot.lane.b32.xlu0 %v95, 16
    %v127 = vpop.permute.xlu0 %126
    %v128 = vsel %vm83, %v125, %v127
    %v129 = vsel %vm83, %v127, %v125
    %v130 = vsel %vm83, 1, 0
    %v131 = vsel %vm84, 1, 0
    %vm132 = vcmp.eq.s32.totalorder %v130, 1
    %vm133 = vcmp.eq.s32.totalorder %v131, 1
    %v134 = vsel %vm132, 0.0, %v129
    %v135 = vsel %vm133, 0.0, %v128
    %136 = vrot.lane.b32.xlu0 %v94, 112
    %v137 = vpop.permute.xlu0 %136
    %138 = vrot.lane.b32.xlu0 %v95, 112
    %v139 = vpop.permute.xlu0 %138
    %vm140 = vcmp.lt.s32.totalorder %v53, 112
    %v141 = vsel %vm140, %v137, %v139
    %v142 = vsel %vm140, %v139, %v137
    %v143 = vsel %vm85, 1, 0
    %v144 = vsel %vm86, 1, 0
    %vm145 = vcmp.eq.s32.totalorder %v143, 1
    %vm146 = vcmp.eq.s32.totalorder %v144, 1
    %v147 = vsel %vm145, 0.0, %v141
    %v148 = vsel %vm146, 0.0, %v142
    %v149 = vsub.f32 %v109, %v122
    %v150 = vsub.f32 %v110, %v123
    %v151 = vsub.f32 %v134, %v147
    %v152 = vsub.f32 %v135, %v148
    %v153 = vmul.f32 %v149, %v149
    %v154 = vmul.f32 %v150, %v150
    %v155 = vmul.f32 %v151, %v151
    %v156 = vmul.f32 %v152, %v152
    %v157 = vadd.f32 %v153, %v155
    %v158 = vadd.f32 %v154, %v156
    %v159 = vadd.f32 %v157, 1e-06
    %v160 = vadd.f32 %v158, 1e-06
    %v161 = vrsqrt.pop %v159
    %v162 = vmul.f32 %v159, %v161
    %vm163 = vcmp.eq.f32.partialorder %v159, inf
    %v164 = vsel %vm163, %v159, %v162
    %vm165 = vcmp.eq.f32.partialorder %v159, 0.0
    %v166 = vand.u32 %v159, 2147483648
    %v167 = vsel %vm165, %v166, %v164
    %v168 = vrsqrt.pop %v160
    %v169 = vmul.f32 %v160, %v168
    %vm170 = vcmp.eq.f32.partialorder %v160, inf
    %v171 = vsel %vm170, %v160, %v169
    %vm172 = vcmp.eq.f32.partialorder %v160, 0.0
    %v173 = vand.u32 %v160, 2147483648
    %v174 = vsel %vm172, %v173, %v171
    %v177 = vunpack.c.l.s4 1983009808
    %v178 = vunpack.c.0.s8 %v177
    %v179 = vlaneseq
    %v180 = vshrl.u32 %v179, 7
    %v181 = vsub.s32 %v178, %v180
    %v182 = vrot.slane %v51, %v181
    %v183 = vcombine.high %v182, %v182
    %186 = vrot.lane.b32.xlu0 %v182, 127
    %v187 = vpop.permute.xlu0 %186
    %188 = vrot.lane.b32.xlu0 %v183, 127
    %v189 = vpop.permute.xlu0 %188
    %v190 = vsel %vm102, %v187, %v189
    %v191 = vsel %vm102, %v189, %v187
    %v192 = vsel %vm107, 0.0, %v190
    %v193 = vsel %vm108, 0.0, %v191
    %194 = vrot.lane.b32.xlu0 %v182, 1
    %v195 = vpop.permute.xlu0 %194
    %196 = vrot.lane.b32.xlu0 %v183, 1
    %v197 = vpop.permute.xlu0 %196
    %v198 = vsel %vm115, %v195, %v197
    %v199 = vsel %vm115, %v197, %v195
    %v200 = vsel %vm120, 0.0, %v199
    %v201 = vsel %vm121, 0.0, %v198
    %202 = vrot.lane.b32.xlu0 %v182, 16
    %v203 = vpop.permute.xlu0 %202
    %204 = vrot.lane.b32.xlu0 %v183, 16
    %v205 = vpop.permute.xlu0 %204
    %v206 = vsel %vm83, %v203, %v205
    %v207 = vsel %vm83, %v205, %v203
    %v208 = vsel %vm132, 0.0, %v207
    %v209 = vsel %vm133, 0.0, %v206
    %210 = vrot.lane.b32.xlu0 %v182, 112
    %v211 = vpop.permute.xlu0 %210
    %212 = vrot.lane.b32.xlu0 %v183, 112
    %v213 = vpop.permute.xlu0 %212
    %v214 = vsel %vm140, %v211, %v213
    %v215 = vsel %vm140, %v213, %v211
    %v216 = vsel %vm145, 0.0, %v214
    %v217 = vsel %vm146, 0.0, %v215
    %v218 = vsub.f32 %v192, %v200
    %v219 = vsub.f32 %v193, %v201
    %v220 = vsub.f32 %v208, %v216
    %v221 = vsub.f32 %v209, %v217
    %v222 = vmul.f32 %v218, %v218
    %v223 = vmul.f32 %v219, %v219
    %v224 = vmul.f32 %v220, %v220
    %v225 = vmul.f32 %v221, %v221
    %v226 = vadd.f32 %v222, %v224
    %v227 = vadd.f32 %v223, %v225
    %v228 = vadd.f32 %v226, 1e-06
    %v229 = vadd.f32 %v227, 1e-06
    %v230 = vrsqrt.pop %v228
    %v231 = vmul.f32 %v228, %v230
    %vm232 = vcmp.eq.f32.partialorder %v228, inf
    %v233 = vsel %vm232, %v228, %v231
    %vm234 = vcmp.eq.f32.partialorder %v228, 0.0
    %v235 = vand.u32 %v228, 2147483648
    %v236 = vsel %vm234, %v235, %v233
    %v237 = vrsqrt.pop %v229
    %v238 = vmul.f32 %v229, %v237
    %vm239 = vcmp.eq.f32.partialorder %v229, inf
    %v240 = vsel %vm239, %v229, %v238
    %vm241 = vcmp.eq.f32.partialorder %v229, 0.0
    %v242 = vand.u32 %v229, 2147483648
    %v243 = vsel %vm241, %v242, %v240
    %v244 = vsub.f32 %v167, %v236
    %v245 = vsub.f32 %v174, %v243
    %v246 = vand.u32 2147483647, %v244
    %v247 = vand.u32 2147483647, %v245
    %vm248 = vcmask 1041408
    %v249 = vsel %vm248, %v246, 0.0
    %v250 = vsel %vm248, %v247, 0.0
    %v251 = vadd.f32 %v249, %v250
    %252 = vadd.xlane.f32.xlu0 %v251
    %v253 = vpop.xlane.xlu0 %252
    %vm254 = vcmask 1024
    %v255 = vsel %vm254, %v253, 0.0
    %256 = vadd.xlane.f32.xlu0 %v255
    %v257 = vpop.xlane.xlu0 %256
    %v258 = vrot.slane %v257, 4
    %v259 = vadd.f32 %v257, %v258
    %v260 = vrot.slane %v259, 2
    %v261 = vadd.f32 %v259, %v260
    %v262 = vrot.slane %v261, 1
    %v263 = vadd.f32 %v261, %v262
    %s264 = vtos %v263
    %s265 = scalar_lea.smem [#allocation7], 0
    %266 = sst [smem:[%s265]] %s264
    // Predicated region
    $region18: #{tpu_custom_call.1} parent=1 // pred_check
      _
    $region19: #{tpu_custom_call.1} parent=1 // pred_check_branch
      %268 = sbr.rel (0) target = $region21
    $region20: #{tpu_custom_call.1} parent=1 // pred_region
      %s270 = ssub.s32 16, 16
      %271 = vsyncadd [#allocation4], %s270
      %274 = dma.smem_to_hbm [#allocation7], 16, %s2, [#allocation4]
    $region21: #{tpu_custom_call.1} parent=1 // pred_fallthru
      _
    // Predicated region
    $region22: #{tpu_custom_call.1} parent=1 // pred_check
      _
    $region23: #{tpu_custom_call.1} parent=1 // pred_check_branch
      %276 = sbr.rel (0) target = $region25
    $region24: #{tpu_custom_call.1} parent=1 // pred_region
      %277 = dma.done [#allocation4], 16
    $region25: #{tpu_custom_call.1} parent=1 // pred_fallthru
      _
    %278 = sfence
    %279 = vsyncpa [#allocation3], 1
    %280 = vsyncpa [#allocation6], 1
    %281 = vsyncpa [#allocation4], 1

</llo_original>
